<compile_context>
chip_gen: v5e
topology: v5e:2x2
jax: 0.10.0
libtpu: 0.0.40
codegen_flags: <defaults>
</compile_context>

<pallas_src>
import functools

import jax
import jax.numpy as jnp
from jax.experimental import pallas as pl
from jax.experimental.pallas import tpu as pltpu

_LANE = 128
# Rows (sublane direction) per block: 8192 * 128 * 4 B = 4 MiB f32 per input
# block -> 16 MiB double-buffered for both inputs, inside the scoped VMEM
# limit set below on v5e / v6e / v7x.
_MAX_ROWS_PER_BLOCK = 8192


def _dice_kernel(logits_ref, targets_ref, score_ref, inter_acc, denom_acc,
                 *, rows_total, tr, mask_rows):
    """grid = (batch, row_tiles); axis 1 is the reduction axis."""
    k = pl.program_id(1)

    @pl.when(k == 0)
    def _init():
        inter_acc[...] = jnp.zeros_like(inter_acc)
        denom_acc[...] = jnp.zeros_like(denom_acc)

    # Inputs may be bf16; accumulate in f32.
    p = jax.nn.sigmoid(logits_ref[...].astype(jnp.float32))
    t = targets_ref[...].astype(jnp.float32)

    if mask_rows:
        # Ragged last row-tile: zero out rows past the true extent so the
        # (unspecified) out-of-bounds data does not contribute to the sums.
        row = jax.lax.broadcasted_iota(jnp.int32, p.shape, 1)
        valid = (k * tr + row) < rows_total
        p = jnp.where(valid, p, 0.0)
        t = jnp.where(valid, t, 0.0)

    inter_acc[...] += jnp.sum(p * t)
    denom_acc[...] += jnp.sum(p + t)   # fused s1 + s2: one XLU reduce + one VPU add

    @pl.when(k == pl.num_programs(1) - 1)
    def _finalize():
        smooth = jnp.float32(1.0)
        score_ref[...] = (2.0 * (inter_acc[...] + smooth)
                          / (denom_acc[...] + smooth))


@functools.partial(jax.jit, static_argnames=("max_rows_per_block",))
def soft_dice_loss(logits, targets, *, max_rows_per_block=_MAX_ROWS_PER_BLOCK):
    """Pallas implementation of SoftDiceLoss.forward(logits, targets)."""
    assert max_rows_per_block % 8 == 0
    num = logits.shape[0]
    m1 = logits.reshape(num, -1)
    m2 = targets.reshape(num, -1)
    d = m1.shape[1]

    # Fold the feature axis onto (rows, 128) lanes.  Only when D is not a
    # multiple of 128 do we pad the small remainder (logits with a large
    # negative so sigmoid -> 0, targets with 0); for lane-aligned D the
    # reshape is a free metadata change and no HBM copy is made.
    d_pad = pl.cdiv(d, _LANE) * _LANE
    if d_pad != d:
        # TODO(synk): the <128-element lane remainder still costs a full-tensor
        # copy via jnp.pad; could be folded into the kernel with lane masking.
        m1 = jnp.pad(m1, ((0, 0), (0, d_pad - d)), constant_values=-1e9)
        m2 = jnp.pad(m2, ((0, 0), (0, d_pad - d)), constant_values=0)
    rows = d_pad // _LANE
    m1 = m1.reshape(num, rows, _LANE)
    m2 = m2.reshape(num, rows, _LANE)

    if rows <= max_rows_per_block:
        tr = rows                      # one row-tile; full-extent block is always legal
    else:
        tr = max_rows_per_block        # multiple of 8
    k_tiles = pl.cdiv(rows, tr)
    mask_rows = (rows % tr) != 0       # ragged last tile -> mask in-kernel

    kernel = functools.partial(_dice_kernel, rows_total=rows, tr=tr,
                               mask_rows=mask_rows)

    score = pl.pallas_call(
        kernel,
        out_shape=jax.ShapeDtypeStruct((num, 1, 1), jnp.float32),
        grid_spec=pltpu.PrefetchScalarGridSpec(
            num_scalar_prefetch=0,
            grid=(num, k_tiles),
            in_specs=[
                pl.BlockSpec((1, tr, _LANE), lambda b, k: (b, k, 0)),
                pl.BlockSpec((1, tr, _LANE), lambda b, k: (b, k, 0)),
            ],
            out_specs=pl.BlockSpec((1, 1, 1), lambda b, k: (b, 0, 0)),
            scratch_shapes=[
                pltpu.VMEM((1, 1, 1), jnp.float32),   # inter accumulator
                pltpu.VMEM((1, 1, 1), jnp.float32),   # denom accumulator
            ],
        ),
        compiler_params=pltpu.CompilerParams(
            # Batch axis is 'parallel' (megacore-sharded on v7x); the row-tile
            # axis is the 'arbitrary' reduction axis.
            dimension_semantics=("parallel", "arbitrary"),
            vmem_limit_bytes=32 * 1024 * 1024,
        ),
    )(m1, m2)

    # Tiny glue: loss = 1 - sum(score)/num
    return 1.0 - jnp.sum(score) / num


def _reference(logits, targets):
    """Pure-JAX reference matching the PyTorch module exactly."""
    num = logits.shape[0]
    smooth = 1.0
    probs = jax.nn.sigmoid(logits)
    m1 = probs.reshape(num, -1)
    m2 = targets.reshape(num, -1)
    inter = (m1 * m2).sum(1)
    score = 2.0 * (inter + smooth) / (m1.sum(1) + m2.sum(1) + smooth)
    return 1.0 - score.sum() / num


if __name__ == "__main__":
    key = jax.random.PRNGKey(0)
    k1, k2, k3, k4 = jax.random.split(key, 4)

    # Test 1: NCHW (2, 4, 16, 16) -> D = 1024, rows = 8, single row-tile.
    logits = jax.random.normal(k1, (2, 4, 16, 16), dtype=jnp.float32)
    targets = (jax.random.uniform(k2, (2, 4, 16, 16)) > 0.5).astype(jnp.float32)
    loss = soft_dice_loss(logits, targets)
    jax.block_until_ready(loss)
    ref = _reference(logits, targets)
    assert jnp.allclose(loss, ref, atol=1e-5, rtol=1e-5), (loss, ref)

    # Test 2: NCHW (2, 6, 16, 16) -> D = 1536, rows = 12; force small row
    # tiles (tr = 8) so the multi-tile reduction + ragged-tile mask path runs.
    logits2 = jax.random.normal(k3, (2, 6, 16, 16), dtype=jnp.float32)
    targets2 = (jax.random.uniform(k4, (2, 6, 16, 16)) > 0.5).astype(jnp.float32)
    loss2 = soft_dice_loss(logits2, targets2, max_rows_per_block=8)
    jax.block_until_ready(loss2)
    ref2 = _reference(logits2, targets2)
    assert jnp.allclose(loss2, ref2, atol=1e-5, rtol=1e-5), (loss2, ref2)

    print("KERNEL_OK")
</pallas_src>

<mosaic_0001>
module attributes {stable_mosaic.version = 11 : i64} {
  func.func @_dice_kernel(%arg0: i32, %arg1: i32, %arg2: memref<1x8x128xf32, #tpu.memory_space<vmem>>, %arg3: memref<1x8x128xf32, #tpu.memory_space<vmem>>, %arg4: memref<1x1x1xf32, #tpu.memory_space<vmem>>, %arg5: memref<1x1x1xf32, #tpu.memory_space<vmem>>, %arg6: memref<1x1x1xf32, #tpu.memory_space<vmem>>) attributes {dimension_semantics = [#tpu.dimension_semantics<parallel>, #tpu.dimension_semantics<arbitrary>], iteration_bounds = array<i64: 2, 1>, scalar_prefetch = 0 : i64, scratch_operands = 2 : i64, tpu.core_type = #tpu.core_type<tc>, window_params = [{transform_indices = @transform_0, window_bounds = array<i64: 1, 8, 128>}, {transform_indices = @transform_1, window_bounds = array<i64: 1, 8, 128>}, {transform_indices = @transform_2, window_bounds = array<i64: 1, 1, 1>}]} {
    %c0_i32 = arith.constant 0 : i32
    %0 = arith.cmpi eq, %arg1, %c0_i32 : i32
    %1 = arith.extui %0 : i1 to i32
    %c0_i32_0 = arith.constant 0 : i32
    %2 = arith.cmpi ne, %1, %c0_i32_0 : i32
    scf.if %2 {
      %cst_22 = arith.constant 0.000000e+00 : f32
      %31 = vector.broadcast %cst_22 : f32 to vector<1x1x1xf32>
      %c0_23 = arith.constant 0 : index
      %c0_24 = arith.constant 0 : index
      %c0_25 = arith.constant 0 : index
      %32 = vector.load %arg5[%c0_23, %c0_24, %c0_25] : memref<1x1x1xf32, #tpu.memory_space<vmem>>, vector<1x1x1xf32>
      tpu.vector_store %arg5[%c0_23, %c0_24, %c0_25], %31 {strides = array<i32>} : memref<1x1x1xf32, #tpu.memory_space<vmem>>, vector<1x1x1xf32>,
      %cst_26 = arith.constant 0.000000e+00 : f32
      %33 = vector.broadcast %cst_26 : f32 to vector<1x1x1xf32>
      %c0_27 = arith.constant 0 : index
      %c0_28 = arith.constant 0 : index
      %c0_29 = arith.constant 0 : index
      %34 = vector.load %arg6[%c0_27, %c0_28, %c0_29] : memref<1x1x1xf32, #tpu.memory_space<vmem>>, vector<1x1x1xf32>
      tpu.vector_store %arg6[%c0_27, %c0_28, %c0_29], %33 {strides = array<i32>} : memref<1x1x1xf32, #tpu.memory_space<vmem>>, vector<1x1x1xf32>,
    } else {
    }
    %c0 = arith.constant 0 : index
    %c0_1 = arith.constant 0 : index
    %c0_2 = arith.constant 0 : index
    %3 = vector.load %arg2[%c0, %c0_1, %c0_2] : memref<1x8x128xf32, #tpu.memory_space<vmem>>, vector<1x8x128xf32>
    %4 = arith.negf %3 : vector<1x8x128xf32>
    %5 = math.exp %4 : vector<1x8x128xf32>
    %cst = arith.constant 1.000000e+00 : f32
    %6 = vector.broadcast %cst : f32 to vector<1x8x128xf32>
    %7 = arith.addf %6, %5 : vector<1x8x128xf32>
    %8 = arith.divf %6, %7 : vector<1x8x128xf32>
    %c0_3 = arith.constant 0 : index
    %c0_4 = arith.constant 0 : index
    %c0_5 = arith.constant 0 : index
    %9 = vector.load %arg3[%c0_3, %c0_4, %c0_5] : memref<1x8x128xf32, #tpu.memory_space<vmem>>, vector<1x8x128xf32>
    %c0_6 = arith.constant 0 : index
    %c0_7 = arith.constant 0 : index
    %c0_8 = arith.constant 0 : index
    %10 = vector.load %arg5[%c0_6, %c0_7, %c0_8] : memref<1x1x1xf32, #tpu.memory_space<vmem>>, vector<1x1x1xf32>
    %11 = arith.mulf %8, %9 : vector<1x8x128xf32>
    %12 = vector.shape_cast %11 : vector<1x8x128xf32> to vector<1x1x8x128xf32>
    %cst_9 = arith.constant dense<0.000000e+00> : vector<1xf32>
    %13 = vector.multi_reduction <add>, %12, %cst_9 [1, 2, 3] : vector<1x1x8x128xf32> to vector<1xf32>
    %14 = vector.shape_cast %13 : vector<1xf32> to vector<1x1x1x1xf32>
    %15 = vector.extract %14[0, 0, 0, 0] : f32 from vector<1x1x1x1xf32>
    %16 = vector.broadcast %15 : f32 to vector<1x1x1xf32>
    %17 = arith.addf %10, %16 : vector<1x1x1xf32>
    %c0_10 = arith.constant 0 : index
    %c0_11 = arith.constant 0 : index
    %c0_12 = arith.constant 0 : index
    %18 = vector.load %arg5[%c0_10, %c0_11, %c0_12] : memref<1x1x1xf32, #tpu.memory_space<vmem>>, vector<1x1x1xf32>
    tpu.vector_store %arg5[%c0_10, %c0_11, %c0_12], %17 {strides = array<i32>} : memref<1x1x1xf32, #tpu.memory_space<vmem>>, vector<1x1x1xf32>,
    %c0_13 = arith.constant 0 : index
    %c0_14 = arith.constant 0 : index
    %c0_15 = arith.constant 0 : index
    %19 = vector.load %arg6[%c0_13, %c0_14, %c0_15] : memref<1x1x1xf32, #tpu.memory_space<vmem>>, vector<1x1x1xf32>
    %20 = arith.addf %8, %9 : vector<1x8x128xf32>
    %21 = vector.shape_cast %20 : vector<1x8x128xf32> to vector<1x1x8x128xf32>
    %cst_16 = arith.constant dense<0.000000e+00> : vector<1xf32>
    %22 = vector.multi_reduction <add>, %21, %cst_16 [1, 2, 3] : vector<1x1x8x128xf32> to vector<1xf32>
    %23 = vector.shape_cast %22 : vector<1xf32> to vector<1x1x1x1xf32>
    %24 = vector.extract %23[0, 0, 0, 0] : f32 from vector<1x1x1x1xf32>
    %25 = vector.broadcast %24 : f32 to vector<1x1x1xf32>
    %26 = arith.addf %19, %25 : vector<1x1x1xf32>
    %c0_17 = arith.constant 0 : index
    %c0_18 = arith.constant 0 : index
    %c0_19 = arith.constant 0 : index
    %27 = vector.load %arg6[%c0_17, %c0_18, %c0_19] : memref<1x1x1xf32, #tpu.memory_space<vmem>>, vector<1x1x1xf32>
    tpu.vector_store %arg6[%c0_17, %c0_18, %c0_19], %26 {strides = array<i32>} : memref<1x1x1xf32, #tpu.memory_space<vmem>>, vector<1x1x1xf32>,
    %c0_i32_20 = arith.constant 0 : i32
    %28 = arith.cmpi eq, %arg1, %c0_i32_20 : i32
    %29 = arith.extui %28 : i1 to i32
    %c0_i32_21 = arith.constant 0 : i32
    %30 = arith.cmpi ne, %29, %c0_i32_21 : i32
    scf.if %30 {
      %c0_22 = arith.constant 0 : index
      %c0_23 = arith.constant 0 : index
      %c0_24 = arith.constant 0 : index
      %31 = vector.load %arg5[%c0_22, %c0_23, %c0_24] : memref<1x1x1xf32, #tpu.memory_space<vmem>>, vector<1x1x1xf32>
      %cst_25 = arith.constant 1.000000e+00 : f32
      %32 = vector.broadcast %cst_25 : f32 to vector<1x1x1xf32>
      %33 = arith.addf %31, %32 : vector<1x1x1xf32>
      %cst_26 = arith.constant 2.000000e+00 : f32
      %34 = vector.broadcast %cst_26 : f32 to vector<1x1x1xf32>
      %35 = arith.mulf %34, %33 : vector<1x1x1xf32>
      %c0_27 = arith.constant 0 : index
      %c0_28 = arith.constant 0 : index
      %c0_29 = arith.constant 0 : index
      %36 = vector.load %arg6[%c0_27, %c0_28, %c0_29] : memref<1x1x1xf32, #tpu.memory_space<vmem>>, vector<1x1x1xf32>
      %cst_30 = arith.constant 1.000000e+00 : f32
      %37 = vector.broadcast %cst_30 : f32 to vector<1x1x1xf32>
      %38 = arith.addf %36, %37 : vector<1x1x1xf32>
      %39 = arith.divf %35, %38 : vector<1x1x1xf32>
      %c0_31 = arith.constant 0 : index
      %c0_32 = arith.constant 0 : index
      %c0_33 = arith.constant 0 : index
      %40 = vector.load %arg4[%c0_31, %c0_32, %c0_33] : memref<1x1x1xf32, #tpu.memory_space<vmem>>, vector<1x1x1xf32>
      tpu.vector_store %arg4[%c0_31, %c0_32, %c0_33], %39 {strides = array<i32>} : memref<1x1x1xf32, #tpu.memory_space<vmem>>, vector<1x1x1xf32>,
    } else {
    }
    return
  }
  func.func @transform_0(%arg0: i32, %arg1: i32) -> (i32, i32, i32) {
    %c0_i32 = arith.constant 0 : i32
    %c0_i32_0 = arith.constant 0 : i32
    return %arg0, %arg1, %c0_i32 : i32, i32, i32
  }
  func.func @transform_1(%arg0: i32, %arg1: i32) -> (i32, i32, i32) {
    %c0_i32 = arith.constant 0 : i32
    %c0_i32_0 = arith.constant 0 : i32
    return %arg0, %arg1, %c0_i32 : i32, i32, i32
  }
  func.func @transform_2(%arg0: i32, %arg1: i32) -> (i32, i32, i32) {
    %c0_i32 = arith.constant 0 : i32
    %c0_i32_0 = arith.constant 0 : i32
    %c0_i32_1 = arith.constant 0 : i32
    return %arg0, %c0_i32, %c0_i32_0 : i32, i32, i32
  }
}

</mosaic_0001>

<llo_original>
// kernel: soft_dice_loss.1
$region0: #{soft_dice_loss.1}
  #allocation0 [shape = 'u32[]', space=smem, size = 0x4, offset = 0x4, fixed_abs, tag = 'smem constant byte address 0x4 - core index']
  #allocation1 [shape = 'u32[72,128]{1,0:T(1,128)}', space=vmem, size = 0x9000, scoped, tag = 'internal scratch']
  #allocation2 [shape = 'f32[1,1,1]{2,1,0:T(1,128)}', space=vmem, size = 0x200, scoped, tag = 'scratch operand']
  #allocation3 [shape = 'f32[1,1,1]{2,1,0:T(1,128)}', space=vmem, size = 0x200, scoped, tag = 'scratch operand']
  %s0 = inlined_call_operand.vmem [shape: f32[2,8,128], index: 0, kind: input, shape index: {}]
  %s1 = inlined_call_operand.vmem [shape: f32[2,8,128], index: 1, kind: input, shape index: {}]
  %s2 = inlined_call_operand.vmem [shape: f32[2,1,1], index: 2, kind: output, shape index: {}]
  %s3 = sld [smem:[#allocation0]]
  $region49: #{soft_dice_loss.1} parent=0
    _
  %s5 = ssub.s32 1, %s3
  %s6 = scalar_select 0, %s5, %s3
  loop: start=0, step=1, limit=4
  $region2: #{soft_dice_loss.1} parent=0 // loop_pre_header
    _
  $region3: #{soft_dice_loss.1} parent=0 // loop_header
    %s8 = sphi 0, %s12
    %p9 = scmp.ge.s32.totalorder %s8, 4
    %s15 = sphi 0, %s27
    %s16 = sphi 0, %s23
    %s17 = sphi 0, %s15
    %s18 = sphi 0, %s16
    %s19 = sphi 0, %s17
    %s20 = sphi 0, %s18
    %s32 = sphi 0, %s34
    %s35 = sphi 0, %s32
    %s36 = sphi 0, %s35
    %s52 = sphi 0, %s36
    %s60 = sphi 0, %s62
    %s63 = sphi 0, %s60
    %s64 = sphi 0, %s63
    %s80 = sphi 0, %s64
    %s86 = sphi 0, %s88
    %s89 = sphi 0, %s86
    %s90 = sphi 0, %s89
    %s106 = sphi 0, %s90
  $region4: #{soft_dice_loss.1} parent=0 // loop_header_branch
    %11 = sbr.rel (%p9) target = $region8
  $region5: #{soft_dice_loss.1} parent=0 // loop_body
    %s13 = ssub.s32 %s8, 1
    %s14 = ssub.s32 %s8, 2
    %s21 = sadd.s32 1, %s16
    %p22 = scmp.ge.s32.totalorder %s21, 1
    %s23 = scalar_select %p22, 0, %s21
    %s24 = sadd.s32 1, %s15
    %s25 = scalar_select %p22, %s24, %s15
    %p26 = scmp.ge.s32.totalorder %s25, 2
    %s27 = scalar_select %p26, 0, %s25
    %s28 = ssub.s32 %s15, %s27
    %s29 = ssub.s32 %s16, %s23
    %s30 = sor.u32 %s28, %s29
    %p31 = scmp.eq.s32.totalorder %s30, 0
    %s33 = sadd.s32 %s32, 1
    %s34 = scalar_select %p31, %s32, %s33
    %p37 = pneg %p31
    %p38 = scmp.eq.s32.totalorder %s8, 1
    %p39 = por %p37, %p38
    %p40 = scmp.ne.s32.totalorder %s32, %s35
    %p41 = scmp.eq.s32.totalorder %s8, 0
    %p42 = por %p40, %p41
    %p43 = scmp.ne.s32.totalorder %s32, %s35
    %p44 = scmp.eq.s32.totalorder %s13, 1
    %p45 = por %p43, %p44
    %p46 = scmp.ne.s32.totalorder %s35, %s36
    %p47 = scmp.eq.s32.totalorder %s13, 0
    %p48 = por %p46, %p47
    %p49 = scmp.ne.s32.totalorder %s35, %s36
    %p50 = scmp.eq.s32.totalorder %s14, 1
    %p51 = por %p49, %p50
    %p53 = scmp.ne.s32.totalorder %s36, %s52
    %p54 = scmp.eq.s32.totalorder %s14, 0
    %p55 = por %p53, %p54
    %s56 = ssub.s32 %s15, %s27
    %s57 = ssub.s32 %s16, %s23
    %s58 = sor.u32 %s56, %s57
    %p59 = scmp.eq.s32.totalorder %s58, 0
    %s61 = sadd.s32 %s60, 1
    %s62 = scalar_select %p59, %s60, %s61
    %p65 = pneg %p59
    %p66 = scmp.eq.s32.totalorder %s8, 1
    %p67 = por %p65, %p66
    %p68 = scmp.ne.s32.totalorder %s60, %s63
    %p69 = scmp.eq.s32.totalorder %s8, 0
    %p70 = por %p68, %p69
    %p71 = scmp.ne.s32.totalorder %s60, %s63
    %p72 = scmp.eq.s32.totalorder %s13, 1
    %p73 = por %p71, %p72
    %p74 = scmp.ne.s32.totalorder %s63, %s64
    %p75 = scmp.eq.s32.totalorder %s13, 0
    %p76 = por %p74, %p75
    %p77 = scmp.ne.s32.totalorder %s63, %s64
    %p78 = scmp.eq.s32.totalorder %s14, 1
    %p79 = por %p77, %p78
    %p81 = scmp.ne.s32.totalorder %s64, %s80
    %p82 = scmp.eq.s32.totalorder %s14, 0
    %p83 = por %p81, %p82
    %s84 = ssub.s32 %s15, %s27
    %p85 = scmp.eq.s32.totalorder %s84, 0
    %s87 = sadd.s32 %s86, 1
    %s88 = scalar_select %p85, %s86, %s87
    %p91 = pneg %p85
    %p92 = scmp.eq.s32.totalorder %s8, 1
    %p93 = por %p91, %p92
    %p94 = scmp.ne.s32.totalorder %s86, %s89
    %p95 = scmp.eq.s32.totalorder %s8, 0
    %p96 = por %p94, %p95
    %p97 = scmp.ne.s32.totalorder %s86, %s89
    %p98 = scmp.eq.s32.totalorder %s13, 1
    %p99 = por %p97, %p98
    %p100 = scmp.ne.s32.totalorder %s89, %s90
    %p101 = scmp.eq.s32.totalorder %s13, 0
    %p102 = por %p100, %p101
    %p103 = scmp.ne.s32.totalorder %s89, %s90
    %p104 = scmp.eq.s32.totalorder %s14, 1
    %p105 = por %p103, %p104
    %p107 = scmp.ne.s32.totalorder %s90, %s106
    %p108 = scmp.eq.s32.totalorder %s14, 0
    %p109 = por %p107, %p108
    %p110 = scmp.le.s32.totalorder 1, %s8
    %p111 = scmp.lt.s32.totalorder %s8, 3
    %p112 = pnand %p110, %p111
    %p113 = pneg %p112
    // Predicated region
    $region9: #{soft_dice_loss.1} parent=5 // pred_check
      _
    $region10: #{soft_dice_loss.1} parent=5 // pred_check_branch
      %115 = sbr.rel (%p112) target = $region12
    $region11: #{soft_dice_loss.1} parent=5 // pred_region
      %s116 = ssub.s32 %s8, 1
    $region12: #{soft_dice_loss.1} parent=5 // pred_fallthru
      _
    %p117 = scmp.lt.s32.totalorder %s8, 2
    // Predicated region
    $region13: #{soft_dice_loss.1} parent=5 // pred_check
      %p118 = pneg %p117
    $region14: #{soft_dice_loss.1} parent=5 // pred_check_branch
      %120 = sbr.rel (%p118) target = $region16
    $region15: #{soft_dice_loss.1} parent=5 // pred_region
      // Predicated region
      $region17: #{soft_dice_loss.1} parent=15 // pred_check
        %p121 = pneg %p42
      $region18: #{soft_dice_loss.1} parent=15 // pred_check_branch
        %123 = sbr.rel (%p121) target = $region20
      $region19: #{soft_dice_loss.1} parent=15 // pred_region
        %p124 = scmp.lt.s32.totalorder %s15, 1
        %s125 = scalar_select %p124, %s15, 1
        %p126 = scmp.lt.s32.totalorder %s16, 0
        %s127 = scalar_select %p126, %s16, 0
        %s128 = sadd.s32 %s127, %s125
        %s129 = smul.addr %s128, 8
        %s130 = scalar_lea.vmem %s0, %s129
      $region20: #{soft_dice_loss.1} parent=15 // pred_fallthru
        _
      // Predicated region
      $region21: #{soft_dice_loss.1} parent=15 // pred_check
        %p131 = pneg %p70
      $region22: #{soft_dice_loss.1} parent=15 // pred_check_branch
        %133 = sbr.rel (%p131) target = $region24
      $region23: #{soft_dice_loss.1} parent=15 // pred_region
        %p134 = scmp.lt.s32.totalorder %s15, 1
        %s135 = scalar_select %p134, %s15, 1
        %p136 = scmp.lt.s32.totalorder %s16, 0
        %s137 = scalar_select %p136, %s16, 0
        %s138 = sadd.s32 %s137, %s135
        %s139 = smul.addr %s138, 8
        %s140 = scalar_lea.vmem %s1, %s139
      $region24: #{soft_dice_loss.1} parent=15 // pred_fallthru
        _
    $region16: #{soft_dice_loss.1} parent=5 // pred_fallthru
      _
    %p141 = scmp.le.s32.totalorder 1, %s8
    %p142 = scmp.lt.s32.totalorder %s8, 3
    %p143 = pnand %p141, %p142
    %p144 = pneg %p143
    // Predicated region
    $region25: #{soft_dice_loss.1} parent=5 // pred_check
      _
    $region26: #{soft_dice_loss.1} parent=5 // pred_check_branch
      %146 = sbr.rel (%p143) target = $region28
    $region27: #{soft_dice_loss.1} parent=5 // pred_region
      %s147 = ssub.s32 %s8, 1
      %p148 = scmp.lt.s32.totalorder %s17, 1
      %s149 = scalar_select %p148, %s17, 1
      %p150 = scmp.lt.s32.totalorder %s18, 0
      %s151 = scalar_select %p150, %s18, 0
      %s152 = sadd.s32 %s151, %s149
      %s153 = smul.addr %s152, 8
      %s154 = scalar_lea.vmem %s0, %s153
      %p155 = pneg %p48
      %p156 = pneg %p45
      %p157 = scmp.lt.s32.totalorder %s17, 1
      %s158 = scalar_select %p157, %s17, 1
      %p159 = scmp.lt.s32.totalorder %s18, 0
      %s160 = scalar_select %p159, %s18, 0
      %s161 = sadd.s32 %s160, %s158
      %s162 = smul.addr %s161, 8
      %s163 = scalar_lea.vmem %s1, %s162
      %p164 = pneg %p76
      %p165 = pneg %p73
      %p166 = pneg %p102
      %p167 = pneg %p99
      %p168 = scmp.lt.s32.totalorder %s17, 1
      %s169 = scalar_select %p168, %s17, 1
      %s170 = scalar_lea.vmem %s2, %s169
      %p171 = scmp.lt.s32.totalorder %s17, 1
      %s172 = scalar_select %p171, %s17, 1
      %p173 = scmp.lt.s32.totalorder %s18, 0
      %s174 = scalar_select %p173, %s18, 0
      %s175 = sadd.s32 %s174, %s172
      %s176 = smul.addr %s175, 8
      %s177 = scalar_lea.vmem %s0, %s176
      %p178 = scmp.lt.s32.totalorder %s17, 1
      %s179 = scalar_select %p178, %s17, 1
      %p180 = scmp.lt.s32.totalorder %s18, 0
      %s181 = scalar_select %p180, %s18, 0
      %s182 = sadd.s32 %s181, %s179
      %s183 = smul.addr %s182, 8
      %s184 = scalar_lea.vmem %s1, %s183
      %p185 = scmp.lt.s32.totalorder %s17, 1
      %s186 = scalar_select %p185, %s17, 1
      %s187 = scalar_lea.vmem %s2, %s186
      %p188 = scmp.eq.s32.totalorder %s18, 0
      // Predicated region
      $region29: #{soft_dice_loss.1} parent=27 // pred_check
        %p189 = pneg %p188
      $region30: #{soft_dice_loss.1} parent=27 // pred_check_branch
        %191 = sbr.rel (%p189) target = $region32
      $region31: #{soft_dice_loss.1} parent=27 // pred_region
        %vm192 = vcmask 0
        %193 = vst.msk [vmem:[#allocation2] sm:$0x1] %vm192, 0.0
        %194 = vst.msk [vmem:[#allocation3] sm:$0x1] %vm192, 0.0
      $region32: #{soft_dice_loss.1} parent=27 // pred_fallthru
        _
      %v195 = vld [vmem:[%s177] sm:$0xff]
      %v196 = vxor.u32 %v195, 2147483648
      %v197 = vmul.f32 %v196, 1.442695
      %v198 = vpow.pop %v197
      %v199 = vadd.f32 %v198, 1.0
      %v200 = vrcp.pop %v199
      %v201 = vmul.f32 %v199, %v200
      %v202 = vsub.f32 1.0, %v201
      %v203 = vmul.f32 %v200, %v202
      %v204 = vadd.f32 %v200, %v203
      %vm205 = vweird.f32 %v199
      %vm206 = vweird.f32 %v200
      %vm207 = vmor %vm205, %vm206
      %v208 = vsel %vm207, %v200, %v204
      %v209 = vand.u32 2147483647, %v199
      %vm210 = vcmp.eq.f32.partialorder %v209, 8.507059e+37
      %v211 = vand.u32 %v199, 2147483648
      %v212 = vor.u32 1.1754944e-38, %v211
      %v213 = vsel %vm210, %v212, %v208
      %v214 = vmul.f32 1.0, %v213
      %v215 = vld [vmem:[%s184] sm:$0xff]
      %v216 = vld [vmem:[#allocation2] sm:$0x1]
      %v217 = vmul.f32 %v214, %v215
      %218 = vadd.xlane.f32.xlu0 %v217
      %v219 = vpop.xlane.xlu0 %218
      %v220 = vrot.slane %v219, 4
      %v221 = vadd.f32 %v219, %v220
      %v222 = vrot.slane %v221, 2
      %v223 = vadd.f32 %v221, %v222
      %v224 = vrot.slane %v223, 1
      %v225 = vadd.f32 %v223, %v224
      %s226 = vtos %v225
      %v227 = vstv %s226
      %v228 = vadd.f32 %v216, %v227
      %vm229 = vcmask 0
      %230 = vst.msk [vmem:[#allocation2] sm:$0x1] %vm229, %v228
      %v231 = vld [vmem:[#allocation3] sm:$0x1]
      %v232 = vadd.f32 %v214, %v215
      %233 = vadd.xlane.f32.xlu0 %v232
      %v234 = vpop.xlane.xlu0 %233
      %v235 = vrot.slane %v234, 4
      %v236 = vadd.f32 %v234, %v235
      %v237 = vrot.slane %v236, 2
      %v238 = vadd.f32 %v236, %v237
      %v239 = vrot.slane %v238, 1
      %v240 = vadd.f32 %v238, %v239
      %s241 = vtos %v240
      %v242 = vstv %s241
      %v243 = vadd.f32 %v231, %v242
      %244 = vst.msk [vmem:[#allocation3] sm:$0x1] %vm229, %v243
      // Predicated region
      $region33: #{soft_dice_loss.1} parent=27 // pred_check
        %p245 = pneg %p188
      $region34: #{soft_dice_loss.1} parent=27 // pred_check_branch
        %247 = sbr.rel (%p245) target = $region36
      $region35: #{soft_dice_loss.1} parent=27 // pred_region
        %v248 = vld [vmem:[#allocation2] sm:$0x1]
        %v249 = vadd.f32 %v248, 1.0
        %v250 = vmul.f32 %v249, 2.0
        %v251 = vld [vmem:[#allocation3] sm:$0x1]
        %v252 = vadd.f32 %v251, 1.0
        %v253 = vrcp.pop %v252
        %v254 = vmul.f32 %v252, %v253
        %v255 = vsub.f32 1.0, %v254
        %v256 = vmul.f32 %v253, %v255
        %v257 = vadd.f32 %v253, %v256
        %vm258 = vweird.f32 %v252
        %vm259 = vweird.f32 %v253
        %vm260 = vmor %vm258, %vm259
        %v261 = vsel %vm260, %v253, %v257
        %v262 = vand.u32 2147483647, %v252
        %vm263 = vcmp.eq.f32.partialorder %v262, 8.507059e+37
        %v264 = vand.u32 %v252, 2147483648
        %v265 = vor.u32 1.1754944e-38, %v264
        %v266 = vsel %vm263, %v265, %v261
        %v267 = vmul.f32 %v250, %v266
        %268 = vst.msk [vmem:[%s187] sm:$0x1] %vm229, %v267
      $region36: #{soft_dice_loss.1} parent=27 // pred_fallthru
        _
      %p269 = scmp.lt.s32.totalorder %s17, 1
      %s270 = scalar_select %p269, %s17, 1
      %s271 = scalar_lea.vmem %s2, %s270
      // Predicated region
      $region37: #{soft_dice_loss.1} parent=27 // pred_check
        %p272 = pneg %p99
      $region38: #{soft_dice_loss.1} parent=27 // pred_check_branch
        %274 = sbr.rel (%p272) target = $region40
      $region39: #{soft_dice_loss.1} parent=27 // pred_region
        _
      $region40: #{soft_dice_loss.1} parent=27 // pred_fallthru
        _
    $region28: #{soft_dice_loss.1} parent=5 // pred_fallthru
      _
    %p275 = scmp.le.s32.totalorder 2, %s8
    // Predicated region
    $region41: #{soft_dice_loss.1} parent=5 // pred_check
      %p276 = pneg %p275
    $region42: #{soft_dice_loss.1} parent=5 // pred_check_branch
      %278 = sbr.rel (%p276) target = $region44
    $region43: #{soft_dice_loss.1} parent=5 // pred_region
      %s279 = ssub.s32 %s8, 2
      // Predicated region
      $region45: #{soft_dice_loss.1} parent=43 // pred_check
        %p280 = pneg %p105
      $region46: #{soft_dice_loss.1} parent=43 // pred_check_branch
        %282 = sbr.rel (%p280) target = $region48
      $region47: #{soft_dice_loss.1} parent=43 // pred_region
        %p283 = scmp.lt.s32.totalorder %s19, 1
        %s284 = scalar_select %p283, %s19, 1
        %s285 = scalar_lea.vmem %s2, %s284
      $region48: #{soft_dice_loss.1} parent=43 // pred_fallthru
        _
    $region44: #{soft_dice_loss.1} parent=5 // pred_fallthru
      _
  $region6: #{soft_dice_loss.1} parent=0 // loop_footer
    %s12 = sadd.s32 1, %s8
  $region7: #{soft_dice_loss.1} parent=0 // loop_footer_branch
    %7 = sbr.rel target = $region3
  $region8: #{soft_dice_loss.1} parent=0 // loop_exit
    _

</llo_original>
